<compile_context>
chip_gen: v7x
topology: tpu7x:2x2x1
jax: 0.10.0
libtpu: 0.0.40
codegen_flags: <defaults>
</compile_context>

<pallas_src>
import jax
import jax.numpy as jnp
from jax.experimental import pallas as pl
from jax.experimental.pallas import tpu as pltpu

# ---- module hyperparameters implied by the PyTorch script (MNIST-like) ----
N0 = 28 * 28                                   # n0 = flattened input size
NL = 10                                        # nL = number of classes
NEURONS_PER_LAYER = [13, 17]
LAYER_SIZES = [N0] + NEURONS_PER_LAYER + [NL]  # [784, 13, 17, 10]

H_PAD = 128                                    # lane-dense width for all layers
DEFAULT_TB = 2048                              # batch tile (rows)


def mlp_kernel(x_ref, w1_ref, b1_ref, w2_ref, b2_ref, w3_ref, b3_ref, o_ref):
    """One batch tile: 3 MXU matmuls + 2 VPU ReLUs, all activations in VMEM."""
    # Layer 1: bf16 x / bf16 w1 on the MXU, f32 accumulation. (tb,784)@(784,128)
    h1 = jnp.dot(x_ref[...], w1_ref[...], preferred_element_type=jnp.float32)
    h1 = jnp.maximum(h1 + b1_ref[...], 0.0)
    # Layer 2 (f32, padded 13->128 in / 17->128 out): (tb,128)@(128,128)
    h2 = jnp.dot(h1, w2_ref[...], preferred_element_type=jnp.float32)
    h2 = jnp.maximum(h2 + b2_ref[...], 0.0)
    # Output layer (padded 17->128 in / 10->128 out): unmasked lane-dense store.
    o_ref[...] = (jnp.dot(h2, w3_ref[...], preferred_element_type=jnp.float32)
                  + b3_ref[...]).astype(o_ref.dtype)


def _round_up(n, m):
    return ((n + m - 1) // m) * m


def _pad2(a, rows, cols):
    """Zero-pad a 2-D array up to (rows, cols)."""
    out = jnp.zeros((rows, cols), a.dtype)
    return out.at[:a.shape[0], :a.shape[1]].set(a)


def neural_network_forward(x_nchw, params, tile_b=DEFAULT_TB):
    """x_nchw: [B, 1, 28, 28] float32. params: list of (W [in,out], b [1,out])."""
    B = x_nchw.shape[0]
    # nn.Flatten(), then cast the streamed operand to bf16 (halves HBM traffic).
    x_flat = x_nchw.reshape(B, -1).astype(jnp.bfloat16)

    (w1, b1), (w2, b2), (w3, b3) = params

    # Zero-pad every layer to 128 lanes -> all in-kernel ops are lane-dense.
    w1p = _pad2(w1.astype(jnp.bfloat16), N0, H_PAD)        # (784, 128) bf16
    b1p = _pad2(b1, 1, H_PAD)                               # (1, 128)   f32
    w2p = _pad2(w2, H_PAD, H_PAD)                           # (128, 128) f32
    b2p = _pad2(b2, 1, H_PAD)
    w3p = _pad2(w3, H_PAD, H_PAD)
    b3p = _pad2(b3, 1, H_PAD)

    # Batch tile: multiple of 8 sublanes; pad B up to a whole number of tiles.
    tb = min(tile_b, _round_up(B, 8))
    B_pad = _round_up(B, tb)
    if B_pad != B:
        x_flat = jnp.pad(x_flat, ((0, B_pad - B), (0, 0)))

    grid = (B_pad // tb,)

    # Weights/biases: full-array blocks, constant index_map -> DMA'd once,
    # resident in VMEM across all grid steps (~0.7 MiB total).
    def resident(shape):
        return pl.BlockSpec(shape, lambda i: tuple(0 for _ in shape))

    out = pl.pallas_call(
        mlp_kernel,
        out_shape=jax.ShapeDtypeStruct((B_pad, H_PAD), jnp.float32),
        grid=grid,
        in_specs=[
            pl.BlockSpec((tb, N0), lambda i: (i, 0)),      # streamed x tiles
            resident(w1p.shape), resident(b1p.shape),
            resident(w2p.shape), resident(b2p.shape),
            resident(w3p.shape), resident(b3p.shape),
        ],
        out_specs=pl.BlockSpec((tb, H_PAD), lambda i: (i, 0)),
        compiler_params=pltpu.CompilerParams(
            dimension_semantics=("parallel",)),            # megacore on v7x
    )(x_flat, w1p, b1p, w2p, b2p, w3p, b3p)

    return out[:B, :NL]


def init_params(key, layer_sizes):
    """PyTorch-style init U(-1/sqrt(fan_in), 1/sqrt(fan_in)).
    Weights stored [in, out] (transposed vs. nn.Linear), biases [1, out]."""
    params = []
    for fan_in, fan_out in zip(layer_sizes[:-1], layer_sizes[1:]):
        key, kw, kb = jax.random.split(key, 3)
        bound = 1.0 / (fan_in ** 0.5)
        w = jax.random.uniform(kw, (fan_in, fan_out), jnp.float32, -bound, bound)
        b = jax.random.uniform(kb, (1, fan_out), jnp.float32, -bound, bound)
        params.append((w, b))
    return params


if __name__ == "__main__":
    key = jax.random.PRNGKey(0)
    key, kx = jax.random.split(key)

    # small batch, MNIST-shaped NCHW input
    x = jax.random.normal(kx, (2, 1, 28, 28), dtype=jnp.float32)
    params = init_params(key, LAYER_SIZES)

    out = jax.block_until_ready(neural_network_forward(x, params))

    # plain-JAX reference with the same bf16 first-layer operands + f32 accumulation
    xf = x.reshape(x.shape[0], -1)
    (w1, b1), (w2, b2), (w3, b3) = params
    h1 = jnp.maximum(
        jnp.dot(xf.astype(jnp.bfloat16), w1.astype(jnp.bfloat16),
                preferred_element_type=jnp.float32) + b1, 0.0)
    h2 = jnp.maximum(jnp.dot(h1, w2, preferred_element_type=jnp.float32) + b2, 0.0)
    ref = jnp.dot(h2, w3, preferred_element_type=jnp.float32) + b3

    assert out.shape == (2, NL)
    assert jnp.allclose(out, ref, atol=5e-3, rtol=5e-3), \
        float(jnp.max(jnp.abs(out - ref)))

    print("KERNEL_OK")
</pallas_src>

<mosaic_0001>
module attributes {stable_mosaic.version = 11 : i64} {
  func.func @mlp_kernel(%arg0: i32, %arg1: memref<8x784xbf16, #tpu.memory_space<vmem>>, %arg2: memref<784x128xbf16, #tpu.memory_space<vmem>>, %arg3: memref<1x128xf32, #tpu.memory_space<vmem>>, %arg4: memref<128x128xf32, #tpu.memory_space<vmem>>, %arg5: memref<1x128xf32, #tpu.memory_space<vmem>>, %arg6: memref<128x128xf32, #tpu.memory_space<vmem>>, %arg7: memref<1x128xf32, #tpu.memory_space<vmem>>, %arg8: memref<8x128xf32, #tpu.memory_space<vmem>>) attributes {dimension_semantics = [#tpu.dimension_semantics<parallel>], iteration_bounds = array<i64: 1>, scalar_prefetch = 0 : i64, scratch_operands = 0 : i64, tpu.core_type = #tpu.core_type<tc>, window_params = [{transform_indices = @transform_0, window_bounds = array<i64: 8, 784>}, {pipeline_mode = #tpu.pipeline_mode<synchronous>, transform_indices = @transform_1, window_bounds = array<i64: 784, 128>}, {pipeline_mode = #tpu.pipeline_mode<synchronous>, transform_indices = @transform_2, window_bounds = array<i64: 1, 128>}, {pipeline_mode = #tpu.pipeline_mode<synchronous>, transform_indices = @transform_3, window_bounds = array<i64: 128, 128>}, {pipeline_mode = #tpu.pipeline_mode<synchronous>, transform_indices = @transform_4, window_bounds = array<i64: 1, 128>}, {pipeline_mode = #tpu.pipeline_mode<synchronous>, transform_indices = @transform_5, window_bounds = array<i64: 128, 128>}, {pipeline_mode = #tpu.pipeline_mode<synchronous>, transform_indices = @transform_6, window_bounds = array<i64: 1, 128>}, {transform_indices = @transform_7, window_bounds = array<i64: 8, 128>}]} {
    %c0 = arith.constant 0 : index
    %c0_0 = arith.constant 0 : index
    %0 = vector.load %arg1[%c0, %c0_0] : memref<8x784xbf16, #tpu.memory_space<vmem>>, vector<8x784xbf16>
    %c0_1 = arith.constant 0 : index
    %c0_2 = arith.constant 0 : index
    %1 = vector.load %arg2[%c0_1, %c0_2] : memref<784x128xbf16, #tpu.memory_space<vmem>>, vector<784x128xbf16>
    %cst = arith.constant dense<0.000000e+00> : vector<8x128xf32>
    %2 = tpu.matmul %0, %1, %cst {dimension_numbers = #tpu.dot_dimension_numbers<[1], [0], [0], [1], [0, 0, 1, 1], [], []>} : vector<8x784xbf16>, vector<784x128xbf16>, vector<8x128xf32> -> vector<8x128xf32>
    %c0_3 = arith.constant 0 : index
    %c0_4 = arith.constant 0 : index
    %3 = vector.load %arg3[%c0_3, %c0_4] : memref<1x128xf32, #tpu.memory_space<vmem>>, vector<1x128xf32>
    %4 = vector.broadcast %3 : vector<1x128xf32> to vector<8x128xf32>
    %5 = arith.addf %2, %4 : vector<8x128xf32>
    %cst_5 = arith.constant 0.000000e+00 : f32
    %6 = vector.broadcast %cst_5 : f32 to vector<8x128xf32>
    %7 = arith.maximumf %5, %6 : vector<8x128xf32>
    %c0_6 = arith.constant 0 : index
    %c0_7 = arith.constant 0 : index
    %8 = vector.load %arg4[%c0_6, %c0_7] : memref<128x128xf32, #tpu.memory_space<vmem>>, vector<128x128xf32>
    %cst_8 = arith.constant dense<0.000000e+00> : vector<8x128xf32>
    %9 = tpu.matmul %7, %8, %cst_8 {dimension_numbers = #tpu.dot_dimension_numbers<[1], [0], [0], [1], [0, 0, 1, 1], [], []>} : vector<8x128xf32>, vector<128x128xf32>, vector<8x128xf32> -> vector<8x128xf32>
    %c0_9 = arith.constant 0 : index
    %c0_10 = arith.constant 0 : index
    %10 = vector.load %arg5[%c0_9, %c0_10] : memref<1x128xf32, #tpu.memory_space<vmem>>, vector<1x128xf32>
    %11 = vector.broadcast %10 : vector<1x128xf32> to vector<8x128xf32>
    %12 = arith.addf %9, %11 : vector<8x128xf32>
    %cst_11 = arith.constant 0.000000e+00 : f32
    %13 = vector.broadcast %cst_11 : f32 to vector<8x128xf32>
    %14 = arith.maximumf %12, %13 : vector<8x128xf32>
    %c0_12 = arith.constant 0 : index
    %c0_13 = arith.constant 0 : index
    %15 = vector.load %arg6[%c0_12, %c0_13] : memref<128x128xf32, #tpu.memory_space<vmem>>, vector<128x128xf32>
    %cst_14 = arith.constant dense<0.000000e+00> : vector<8x128xf32>
    %16 = tpu.matmul %14, %15, %cst_14 {dimension_numbers = #tpu.dot_dimension_numbers<[1], [0], [0], [1], [0, 0, 1, 1], [], []>} : vector<8x128xf32>, vector<128x128xf32>, vector<8x128xf32> -> vector<8x128xf32>
    %c0_15 = arith.constant 0 : index
    %c0_16 = arith.constant 0 : index
    %17 = vector.load %arg7[%c0_15, %c0_16] : memref<1x128xf32, #tpu.memory_space<vmem>>, vector<1x128xf32>
    %18 = vector.broadcast %17 : vector<1x128xf32> to vector<8x128xf32>
    %19 = arith.addf %16, %18 : vector<8x128xf32>
    %c0_17 = arith.constant 0 : index
    %c0_18 = arith.constant 0 : index
    %20 = vector.load %arg8[%c0_17, %c0_18] : memref<8x128xf32, #tpu.memory_space<vmem>>, vector<8x128xf32>
    tpu.vector_store %arg8[%c0_17, %c0_18], %19 {strides = array<i32>} : memref<8x128xf32, #tpu.memory_space<vmem>>, vector<8x128xf32>,
    return
  }
  func.func @transform_0(%arg0: i32) -> (i32, i32) {
    %c0_i32 = arith.constant 0 : i32
    %c0_i32_0 = arith.constant 0 : i32
    return %arg0, %c0_i32 : i32, i32
  }
  func.func @transform_1(%arg0: i32) -> (i32, i32) {
    %c0_i32 = arith.constant 0 : i32
    %c0_i32_0 = arith.constant 0 : i32
    %c0_i32_1 = arith.constant 0 : i32
    return %c0_i32, %c0_i32_0 : i32, i32
  }
  func.func @transform_2(%arg0: i32) -> (i32, i32) {
    %c0_i32 = arith.constant 0 : i32
    %c0_i32_0 = arith.constant 0 : i32
    %c0_i32_1 = arith.constant 0 : i32
    return %c0_i32, %c0_i32_0 : i32, i32
  }
  func.func @transform_3(%arg0: i32) -> (i32, i32) {
    %c0_i32 = arith.constant 0 : i32
    %c0_i32_0 = arith.constant 0 : i32
    %c0_i32_1 = arith.constant 0 : i32
    return %c0_i32, %c0_i32_0 : i32, i32
  }
  func.func @transform_4(%arg0: i32) -> (i32, i32) {
    %c0_i32 = arith.constant 0 : i32
    %c0_i32_0 = arith.constant 0 : i32
    %c0_i32_1 = arith.constant 0 : i32
    return %c0_i32, %c0_i32_0 : i32, i32
  }
  func.func @transform_5(%arg0: i32) -> (i32, i32) {
    %c0_i32 = arith.constant 0 : i32
    %c0_i32_0 = arith.constant 0 : i32
    %c0_i32_1 = arith.constant 0 : i32
    return %c0_i32, %c0_i32_0 : i32, i32
  }
  func.func @transform_6(%arg0: i32) -> (i32, i32) {
    %c0_i32 = arith.constant 0 : i32
    %c0_i32_0 = arith.constant 0 : i32
    %c0_i32_1 = arith.constant 0 : i32
    return %c0_i32, %c0_i32_0 : i32, i32
  }
  func.func @transform_7(%arg0: i32) -> (i32, i32) {
    %c0_i32 = arith.constant 0 : i32
    %c0_i32_0 = arith.constant 0 : i32
    return %arg0, %c0_i32 : i32, i32
  }
}

</mosaic_0001>

<llo_original>
// kernel: tpu_custom_call.1
$region0: #{tpu_custom_call.1}
  #allocation0 [shape = 'u32[]', space=smem, size = 0x4, offset = 0x4, fixed_abs, tag = 'smem constant byte address 0x4 - core index']
  #allocation1 [shape = 'u32[144,128]{1,0:T(1,128)}', space=vmem, size = 0x12000, scoped, tag = 'internal scratch']
  %s0 = inlined_call_operand.hbm [shape: bf16[8,784], index: 0, kind: input, shape index: {}]
  %s1 = inlined_call_operand.hbm [shape: bf16[784,128], index: 1, kind: input, shape index: {}]
  %s2 = inlined_call_operand.vmem [shape: f32[1,128], index: 2, kind: input, shape index: {}]
  %s3 = inlined_call_operand.hbm [shape: f32[128,128], index: 3, kind: input, shape index: {}]
  %s4 = inlined_call_operand.vmem [shape: f32[1,128], index: 4, kind: input, shape index: {}]
  %s5 = inlined_call_operand.hbm [shape: f32[128,128], index: 5, kind: input, shape index: {}]
  %s6 = inlined_call_operand.vmem [shape: f32[1,128], index: 6, kind: input, shape index: {}]
  %s7 = inlined_call_operand.hbm [shape: f32[8,128], index: 7, kind: output, shape index: {}]
  %s8 = sld [smem:[#allocation0]]
  $region54: #{tpu_custom_call.1} parent=0
    _
  %s10 = ssub.s32 1, %s8
  %s11 = scalar_select 0, %s10, %s8
  $region1: #{tpu_custom_call.1} parent=0
    #allocation2 [shape = 'u8[14336]{0}', space=vmem, size = 0x3800, scoped, tag = 'input window, operand 0, single buffered']
    #allocation3 [shape = 's32[1]{0}', space=sflag, size = 0x4, scoped, tag = 'scoped memory for tpu_custom_call.1']
    #allocation4 [shape = 's32[1]{0}', space=sflag, size = 0x4, scoped, tag = 'scoped memory for tpu_custom_call.1']
    #allocation5 [shape = 'u8[200704]{0}', space=vmem, size = 0x31000, scoped, tag = 'input window, operand 1, single buffered']
    #allocation6 [shape = 's32[1]{0}', space=sflag, size = 0x4, scoped, tag = 'scoped memory for tpu_custom_call.1']
    #allocation7 [shape = 'u8[65536]{0}', space=vmem, size = 0x10000, scoped, tag = 'input window, operand 3, single buffered']
    #allocation8 [shape = 'u8[65536]{0}', space=vmem, size = 0x10000, scoped, tag = 'input window, operand 5, single buffered']
    #allocation9 [shape = 's32[1]{0}', space=sflag, size = 0x4, scoped, tag = 'scoped memory for tpu_custom_call.1']
    #allocation10 [shape = 'u8[4096]{0}', space=vmem, size = 0x1000, scoped, tag = 'output window, operand 0, single buffered']
    %12 = vsyncpa [#allocation3], 0
    %13 = vsyncpa [#allocation6], 0
    %14 = vsyncpa [#allocation9], 0
    %15 = vsyncpa [#allocation4], 0
    // Predicated region
    $region2: #{tpu_custom_call.1} parent=1 // pred_check
      _
    $region3: #{tpu_custom_call.1} parent=1 // pred_check_branch
      %17 = sbr.rel (0) target = $region5
    $region4: #{tpu_custom_call.1} parent=1 // pred_region
      %s19 = ssub.s32 448, 448
      %20 = vsyncadd [#allocation3], %s19
      %s22 = sshll.u32 [#allocation2], 4
      %s23 = int_to_ptr.vmem [resolvable:$true] %s22
      %25 = dma.hbm_to_vmem [thread:$0]  %s0, 448, %s23, [#allocation3]
    $region5: #{tpu_custom_call.1} parent=1 // pred_fallthru
      _
    // Predicated region
    $region6: #{tpu_custom_call.1} parent=1 // pred_check
      _
    $region7: #{tpu_custom_call.1} parent=1 // pred_check_branch
      %27 = sbr.rel (0) target = $region9
    $region8: #{tpu_custom_call.1} parent=1 // pred_region
      %s29 = ssub.s32 6272, 6272
      %30 = vsyncadd [#allocation6], %s29
      %s31 = sshll.u32 [#allocation5], 4
      %s32 = int_to_ptr.vmem [resolvable:$true] %s31
      %37 = dma.hbm_to_vmem [thread:$0]  %s1, 6272, %s32, [#allocation6], 64, 64, 4
    $region9: #{tpu_custom_call.1} parent=1 // pred_fallthru
      _
    // Predicated region
    $region10: #{tpu_custom_call.1} parent=1 // pred_check
      _
    $region11: #{tpu_custom_call.1} parent=1 // pred_check_branch
      %39 = sbr.rel (0) target = $region13
    $region12: #{tpu_custom_call.1} parent=1 // pred_region
      _
    $region13: #{tpu_custom_call.1} parent=1 // pred_fallthru
      _
    // Predicated region
    $region14: #{tpu_custom_call.1} parent=1 // pred_check
      _
    $region15: #{tpu_custom_call.1} parent=1 // pred_check_branch
      %41 = sbr.rel (0) target = $region17
    $region16: #{tpu_custom_call.1} parent=1 // pred_region
      %s43 = ssub.s32 2048, 2048
      %44 = vsyncadd [#allocation6], %s43
      %s45 = sshll.u32 [#allocation7], 4
      %s46 = int_to_ptr.vmem [resolvable:$true] %s45
      %51 = dma.hbm_to_vmem [thread:$0]  %s3, 2048, %s46, [#allocation6], 128, 128, 8
    $region17: #{tpu_custom_call.1} parent=1 // pred_fallthru
      _
    // Predicated region
    $region18: #{tpu_custom_call.1} parent=1 // pred_check
      _
    $region19: #{tpu_custom_call.1} parent=1 // pred_check_branch
      %53 = sbr.rel (0) target = $region21
    $region20: #{tpu_custom_call.1} parent=1 // pred_region
      _
    $region21: #{tpu_custom_call.1} parent=1 // pred_fallthru
      _
    // Predicated region
    $region22: #{tpu_custom_call.1} parent=1 // pred_check
      _
    $region23: #{tpu_custom_call.1} parent=1 // pred_check_branch
      %55 = sbr.rel (0) target = $region25
    $region24: #{tpu_custom_call.1} parent=1 // pred_region
      %s57 = ssub.s32 2048, 2048
      %58 = vsyncadd [#allocation9], %s57
      %s59 = sshll.u32 [#allocation8], 4
      %s60 = int_to_ptr.vmem [resolvable:$true] %s59
      %65 = dma.hbm_to_vmem [thread:$0]  %s5, 2048, %s60, [#allocation9], 128, 128, 8
    $region25: #{tpu_custom_call.1} parent=1 // pred_fallthru
      _
    // Predicated region
    $region26: #{tpu_custom_call.1} parent=1 // pred_check
      _
    $region27: #{tpu_custom_call.1} parent=1 // pred_check_branch
      %67 = sbr.rel (0) target = $region29
    $region28: #{tpu_custom_call.1} parent=1 // pred_region
      _
    $region29: #{tpu_custom_call.1} parent=1 // pred_fallthru
      _
    // Predicated region
    $region30: #{tpu_custom_call.1} parent=1 // pred_check
      _
    $region31: #{tpu_custom_call.1} parent=1 // pred_check_branch
      %69 = sbr.rel (0) target = $region33
    $region32: #{tpu_custom_call.1} parent=1 // pred_region
      %70 = dma.done [#allocation3], 448
    $region33: #{tpu_custom_call.1} parent=1 // pred_fallthru
      _
    // Predicated region
    $region34: #{tpu_custom_call.1} parent=1 // pred_check
      _
    $region35: #{tpu_custom_call.1} parent=1 // pred_check_branch
      %72 = sbr.rel (0) target = $region37
    $region36: #{tpu_custom_call.1} parent=1 // pred_region
      %73 = dma.done [#allocation6], 6272
    $region37: #{tpu_custom_call.1} parent=1 // pred_fallthru
      _
    // Predicated region
    $region38: #{tpu_custom_call.1} parent=1 // pred_check
      _
    $region39: #{tpu_custom_call.1} parent=1 // pred_check_branch
      %75 = sbr.rel (0) target = $region41
    $region40: #{tpu_custom_call.1} parent=1 // pred_region
      %76 = dma.done [#allocation6], 2048
    $region41: #{tpu_custom_call.1} parent=1 // pred_fallthru
      _
    // Predicated region
    $region42: #{tpu_custom_call.1} parent=1 // pred_check
      _
    $region43: #{tpu_custom_call.1} parent=1 // pred_check_branch
      %78 = sbr.rel (0) target = $region45
    $region44: #{tpu_custom_call.1} parent=1 // pred_region
      %79 = dma.done [#allocation9], 2048
    $region45: #{tpu_custom_call.1} parent=1 // pred_fallthru
      _
    %v81 = vld [vmem:[#allocation2] sm:$0xff]
    %v82 = vld [vmem:[#allocation2 + $0x8] sm:$0xff]
    %v83 = vld [vmem:[#allocation2 + $0x10] sm:$0xff]
    %v84 = vld [vmem:[#allocation2 + $0x18] sm:$0xf]
    %v85 = vld [vmem:[#allocation5] sm:$0xf]
    %v86 = vld [vmem:[#allocation5 + $0x4] sm:$0xf]
    %v87 = vld [vmem:[#allocation5 + $0x8] sm:$0xf]
    %v88 = vld [vmem:[#allocation5 + $0xc] sm:$0xf]
    %v89 = vld [vmem:[#allocation5 + $0x10] sm:$0xf]
    %v90 = vld [vmem:[#allocation5 + $0x14] sm:$0xf]
    %v91 = vld [vmem:[#allocation5 + $0x18] sm:$0xf]
    %v92 = vld [vmem:[#allocation5 + $0x1c] sm:$0xf]
    %v93 = vld [vmem:[#allocation5 + $0x20] sm:$0xf]
    %v94 = vld [vmem:[#allocation5 + $0x24] sm:$0xf]
    %v95 = vld [vmem:[#allocation5 + $0x28] sm:$0xf]
    %v96 = vld [vmem:[#allocation5 + $0x2c] sm:$0xf]
    %v97 = vld [vmem:[#allocation5 + $0x30] sm:$0xf]
    %v98 = vld [vmem:[#allocation5 + $0x34] sm:$0xf]
    %v99 = vld [vmem:[#allocation5 + $0x38] sm:$0xf]
    %v100 = vld [vmem:[#allocation5 + $0x3c] sm:$0xf]
    %v101 = vld [vmem:[#allocation5 + $0x40] sm:$0xf]
    %v102 = vld [vmem:[#allocation5 + $0x44] sm:$0xf]
    %v103 = vld [vmem:[#allocation5 + $0x48] sm:$0xf]
    %v104 = vld [vmem:[#allocation5 + $0x4c] sm:$0xf]
    %v105 = vld [vmem:[#allocation5 + $0x50] sm:$0xf]
    %v106 = vld [vmem:[#allocation5 + $0x54] sm:$0xf]
    %v107 = vld [vmem:[#allocation5 + $0x58] sm:$0xf]
    %v108 = vld [vmem:[#allocation5 + $0x5c] sm:$0xf]
    %v109 = vld [vmem:[#allocation5 + $0x60] sm:$0xf]
    %v110 = vld [vmem:[#allocation5 + $0x64] sm:$0xf]
    %v111 = vld [vmem:[#allocation5 + $0x68] sm:$0xf]
    %v112 = vld [vmem:[#allocation5 + $0x6c] sm:$0xf]
    %v113 = vld [vmem:[#allocation5 + $0x70] sm:$0xf]
    %v114 = vld [vmem:[#allocation5 + $0x74] sm:$0xf]
    %v115 = vld [vmem:[#allocation5 + $0x78] sm:$0xf]
    %v116 = vld [vmem:[#allocation5 + $0x7c] sm:$0xf]
    %v117 = vld [vmem:[#allocation5 + $0x80] sm:$0xf]
    %v118 = vld [vmem:[#allocation5 + $0x84] sm:$0xf]
    %v119 = vld [vmem:[#allocation5 + $0x88] sm:$0xf]
    %v120 = vld [vmem:[#allocation5 + $0x8c] sm:$0xf]
    %v121 = vld [vmem:[#allocation5 + $0x90] sm:$0xf]
    %v122 = vld [vmem:[#allocation5 + $0x94] sm:$0xf]
    %v123 = vld [vmem:[#allocation5 + $0x98] sm:$0xf]
    %v124 = vld [vmem:[#allocation5 + $0x9c] sm:$0xf]
    %v125 = vld [vmem:[#allocation5 + $0xa0] sm:$0xf]
    %v126 = vld [vmem:[#allocation5 + $0xa4] sm:$0xf]
    %v127 = vld [vmem:[#allocation5 + $0xa8] sm:$0xf]
    %v128 = vld [vmem:[#allocation5 + $0xac] sm:$0xf]
    %v129 = vld [vmem:[#allocation5 + $0xb0] sm:$0xf]
    %v130 = vld [vmem:[#allocation5 + $0xb4] sm:$0xf]
    %v131 = vld [vmem:[#allocation5 + $0xb8] sm:$0xf]
    %v132 = vld [vmem:[#allocation5 + $0xbc] sm:$0xf]
    %v133 = vld [vmem:[#allocation5 + $0xc0] sm:$0xf]
    %v134 = vld [vmem:[#allocation5 + $0xc4] sm:$0xf]
    %v135 = vld [vmem:[#allocation5 + $0xc8] sm:$0xf]
    %v136 = vld [vmem:[#allocation5 + $0xcc] sm:$0xf]
    %v137 = vld [vmem:[#allocation5 + $0xd0] sm:$0xf]
    %v138 = vld [vmem:[#allocation5 + $0xd4] sm:$0xf]
    %v139 = vld [vmem:[#allocation5 + $0xd8] sm:$0xf]
    %v140 = vld [vmem:[#allocation5 + $0xdc] sm:$0xf]
    %v141 = vld [vmem:[#allocation5 + $0xe0] sm:$0xf]
    %v142 = vld [vmem:[#allocation5 + $0xe4] sm:$0xf]
    %v143 = vld [vmem:[#allocation5 + $0xe8] sm:$0xf]
    %v144 = vld [vmem:[#allocation5 + $0xec] sm:$0xf]
    %v145 = vld [vmem:[#allocation5 + $0xf0] sm:$0xf]
    %v146 = vld [vmem:[#allocation5 + $0xf4] sm:$0xf]
    %v147 = vld [vmem:[#allocation5 + $0xf8] sm:$0xf]
    %v148 = vld [vmem:[#allocation5 + $0xfc] sm:$0xf]
    %v149 = vld [vmem:[#allocation5 + $0x100] sm:$0xf]
    %v150 = vld [vmem:[#allocation5 + $0x104] sm:$0xf]
    %v151 = vld [vmem:[#allocation5 + $0x108] sm:$0xf]
    %v152 = vld [vmem:[#allocation5 + $0x10c] sm:$0xf]
    %v153 = vld [vmem:[#allocation5 + $0x110] sm:$0xf]
    %v154 = vld [vmem:[#allocation5 + $0x114] sm:$0xf]
    %v155 = vld [vmem:[#allocation5 + $0x118] sm:$0xf]
    %v156 = vld [vmem:[#allocation5 + $0x11c] sm:$0xf]
    %v157 = vld [vmem:[#allocation5 + $0x120] sm:$0xf]
    %v158 = vld [vmem:[#allocation5 + $0x124] sm:$0xf]
    %v159 = vld [vmem:[#allocation5 + $0x128] sm:$0xf]
    %v160 = vld [vmem:[#allocation5 + $0x12c] sm:$0xf]
    %v161 = vld [vmem:[#allocation5 + $0x130] sm:$0xf]
    %v162 = vld [vmem:[#allocation5 + $0x134] sm:$0xf]
    %v163 = vld [vmem:[#allocation5 + $0x138] sm:$0xf]
    %v164 = vld [vmem:[#allocation5 + $0x13c] sm:$0xf]
    %v165 = vld [vmem:[#allocation5 + $0x140] sm:$0xf]
    %v166 = vld [vmem:[#allocation5 + $0x144] sm:$0xf]
    %v167 = vld [vmem:[#allocation5 + $0x148] sm:$0xf]
    %v168 = vld [vmem:[#allocation5 + $0x14c] sm:$0xf]
    %v169 = vld [vmem:[#allocation5 + $0x150] sm:$0xf]
    %v170 = vld [vmem:[#allocation5 + $0x154] sm:$0xf]
    %v171 = vld [vmem:[#allocation5 + $0x158] sm:$0xf]
    %v172 = vld [vmem:[#allocation5 + $0x15c] sm:$0xf]
    %v173 = vld [vmem:[#allocation5 + $0x160] sm:$0xf]
    %v174 = vld [vmem:[#allocation5 + $0x164] sm:$0xf]
    %v175 = vld [vmem:[#allocation5 + $0x168] sm:$0xf]
    %v176 = vld [vmem:[#allocation5 + $0x16c] sm:$0xf]
    %v177 = vld [vmem:[#allocation5 + $0x170] sm:$0xf]
    %v178 = vld [vmem:[#allocation5 + $0x174] sm:$0xf]
    %v179 = vld [vmem:[#allocation5 + $0x178] sm:$0xf]
    %v180 = vld [vmem:[#allocation5 + $0x17c] sm:$0xf]
    %v181 = vld [vmem:[#allocation5 + $0x180] sm:$0xf]
    %v182 = vld [vmem:[#allocation5 + $0x184] sm:$0xf]
    %v183 = vld [vmem:[%s2] sm:$0x1]
    %v185 = vlaneseq
    %v186 = vshrl.u32 %v185, 7
    %v187 = vsub.s32 0, %v186
    %v188 = vrot.slane %v183, %v187
    %v194 = vunpack.c.l.b16 %v81
    %v195 = vunpack.c.h.b16 %v81
    %v196 = vunpack.c.l.b16 %v82
    %v197 = vunpack.c.h.b16 %v82
    %v198 = vunpack.c.l.b16 %v83
    %v199 = vunpack.c.h.b16 %v83
    %v200 = vunpack.c.l.b16 %v84
    %v201 = vpack.c.b16 %v194, %v194
    %v202 = vpack.c.b16 %v195, %v195
    %v203 = vpack.c.b16 %v196, %v196
    %v204 = vpack.c.b16 %v197, %v197
    %v205 = vpack.c.b16 %v198, %v198
    %v206 = vpack.c.b16 %v199, %v199
    %v207 = vpack.c.b16 %v200, %v200
    %v312 = vunpack.c.l.b16 %v85
    %v313 = vunpack.c.l.b16 %v86
    %v314 = vunpack.c.l.b16 %v87
    %v315 = vunpack.c.l.b16 %v88
    %v316 = vunpack.c.l.b16 %v89
    %v317 = vunpack.c.l.b16 %v90
    %v318 = vunpack.c.l.b16 %v91
    %v319 = vunpack.c.l.b16 %v92
    %v320 = vunpack.c.l.b16 %v93
    %v321 = vunpack.c.l.b16 %v94
    %v322 = vunpack.c.l.b16 %v95
    %v323 = vunpack.c.l.b16 %v96
    %v324 = vunpack.c.l.b16 %v97
    %v325 = vunpack.c.l.b16 %v98
    %v326 = vunpack.c.l.b16 %v99
    %v327 = vunpack.c.l.b16 %v100
    %v328 = vunpack.c.l.b16 %v101
    %v329 = vunpack.c.l.b16 %v102
    %v330 = vunpack.c.l.b16 %v103
    %v331 = vunpack.c.l.b16 %v104
    %v332 = vunpack.c.l.b16 %v105
    %v333 = vunpack.c.l.b16 %v106
    %v334 = vunpack.c.l.b16 %v107
    %v335 = vunpack.c.l.b16 %v108
    %v336 = vunpack.c.l.b16 %v109
    %v337 = vunpack.c.l.b16 %v110
    %v338 = vunpack.c.l.b16 %v111
    %v339 = vunpack.c.l.b16 %v112
    %v340 = vunpack.c.l.b16 %v113
    %v341 = vunpack.c.l.b16 %v114
    %v342 = vunpack.c.l.b16 %v115
    %v343 = vunpack.c.l.b16 %v116
    %v344 = vunpack.c.l.b16 %v117
    %v345 = vunpack.c.l.b16 %v118
    %v346 = vunpack.c.l.b16 %v119
    %v347 = vunpack.c.l.b16 %v120
    %v348 = vunpack.c.l.b16 %v121
    %v349 = vunpack.c.l.b16 %v122
    %v350 = vunpack.c.l.b16 %v123
    %v351 = vunpack.c.l.b16 %v124
    %v352 = vunpack.c.l.b16 %v125
    %v353 = vunpack.c.l.b16 %v126
    %v354 = vunpack.c.l.b16 %v127
    %v355 = vunpack.c.l.b16 %v128
    %v356 = vunpack.c.l.b16 %v129
    %v357 = vunpack.c.l.b16 %v130
    %v358 = vunpack.c.l.b16 %v131
    %v359 = vunpack.c.l.b16 %v132
    %v360 = vunpack.c.l.b16 %v133
    %v361 = vunpack.c.l.b16 %v134
    %v362 = vunpack.c.l.b16 %v135
    %v363 = vunpack.c.l.b16 %v136
    %v364 = vunpack.c.l.b16 %v137
    %v365 = vunpack.c.l.b16 %v138
    %v366 = vunpack.c.l.b16 %v139
    %v367 = vunpack.c.l.b16 %v140
    %v368 = vunpack.c.l.b16 %v141
    %v369 = vunpack.c.l.b16 %v142
    %v370 = vunpack.c.l.b16 %v143
    %v371 = vunpack.c.l.b16 %v144
    %v372 = vunpack.c.l.b16 %v145
    %v373 = vunpack.c.l.b16 %v146
    %v374 = vunpack.c.l.b16 %v147
    %v375 = vunpack.c.l.b16 %v148
    %v376 = vunpack.c.l.b16 %v149
    %v377 = vunpack.c.l.b16 %v150
    %v378 = vunpack.c.l.b16 %v151
    %v379 = vunpack.c.l.b16 %v152
    %v380 = vunpack.c.l.b16 %v153
    %v381 = vunpack.c.l.b16 %v154
    %v382 = vunpack.c.l.b16 %v155
    %v383 = vunpack.c.l.b16 %v156
    %v384 = vunpack.c.l.b16 %v157
    %v385 = vunpack.c.l.b16 %v158
    %v386 = vunpack.c.l.b16 %v159
    %v387 = vunpack.c.l.b16 %v160
    %v388 = vunpack.c.l.b16 %v161
    %v389 = vunpack.c.l.b16 %v162
    %v390 = vunpack.c.l.b16 %v163
    %v391 = vunpack.c.l.b16 %v164
    %v392 = vunpack.c.l.b16 %v165
    %v393 = vunpack.c.l.b16 %v166
    %v394 = vunpack.c.l.b16 %v167
    %v395 = vunpack.c.l.b16 %v168
    %v396 = vunpack.c.l.b16 %v169
    %v397 = vunpack.c.l.b16 %v170
    %v398 = vunpack.c.l.b16 %v171
    %v399 = vunpack.c.l.b16 %v172
    %v400 = vunpack.c.l.b16 %v173
    %v401 = vunpack.c.l.b16 %v174
    %v402 = vunpack.c.l.b16 %v175
    %v403 = vunpack.c.l.b16 %v176
    %v404 = vunpack.c.l.b16 %v177
    %v405 = vunpack.c.l.b16 %v178
    %v406 = vunpack.c.l.b16 %v179
    %v407 = vunpack.c.l.b16 %v180
    %v408 = vunpack.c.l.b16 %v181
    %v409 = vunpack.c.l.b16 %v182
    %v410 = vpack.c.b16 %v313, %v312
    %v411 = vpack.c.b16 %v315, %v314
    %v412 = vpack.c.b16 %v317, %v316
    %v413 = vpack.c.b16 %v319, %v318
    %v414 = vpack.c.b16 %v321, %v320
    %v415 = vpack.c.b16 %v323, %v322
    %v416 = vpack.c.b16 %v325, %v324
    %v417 = vpack.c.b16 %v327, %v326
    %v418 = vpack.c.b16 %v329, %v328
    %v419 = vpack.c.b16 %v331, %v330
    %v420 = vpack.c.b16 %v333, %v332
    %v421 = vpack.c.b16 %v335, %v334
    %v422 = vpack.c.b16 %v337, %v336
    %v423 = vpack.c.b16 %v339, %v338
    %v424 = vpack.c.b16 %v341, %v340
    %v425 = vpack.c.b16 %v343, %v342
    %v426 = vpack.c.b16 %v345, %v344
    %v427 = vpack.c.b16 %v347, %v346
    %v428 = vpack.c.b16 %v349, %v348
    %v429 = vpack.c.b16 %v351, %v350
    %v430 = vpack.c.b16 %v353, %v352
    %v431 = vpack.c.b16 %v355, %v354
    %v432 = vpack.c.b16 %v357, %v356
    %v433 = vpack.c.b16 %v359, %v358
    %v434 = vpack.c.b16 %v361, %v360
    %v435 = vpack.c.b16 %v363, %v362
    %v436 = vpack.c.b16 %v365, %v364
    %v437 = vpack.c.b16 %v367, %v366
    %v438 = vpack.c.b16 %v369, %v368
    %v439 = vpack.c.b16 %v371, %v370
    %v440 = vpack.c.b16 %v373, %v372
    %v441 = vpack.c.b16 %v375, %v374
    %v442 = vpack.c.b16 %v377, %v376
    %v443 = vpack.c.b16 %v379, %v378
    %v444 = vpack.c.b16 %v381, %v380
    %v445 = vpack.c.b16 %v383, %v382
    %v446 = vpack.c.b16 %v385, %v384
    %v447 = vpack.c.b16 %v387, %v386
    %v448 = vpack.c.b16 %v389, %v388
    %v449 = vpack.c.b16 %v391, %v390
    %v450 = vpack.c.b16 %v393, %v392
    %v451 = vpack.c.b16 %v395, %v394
    %v452 = vpack.c.b16 %v397, %v396
    %v453 = vpack.c.b16 %v399, %v398
    %v454 = vpack.c.b16 %v401, %v400
    %v455 = vpack.c.b16 %v403, %v402
    %v456 = vpack.c.b16 %v405, %v404
    %v457 = vpack.c.b16 %v407, %v406
    %v458 = vpack.c.b16 %v409, %v408
    %vm508 = vcmask 130048
    %v510 = vsel %vm508, %v207, 0
    %512 = vmatprep.subr.bf16.mxu0 0
    %513 = vmatpush1.bf16.msra.mxu0 %v410
    %514 = vmatprep.subr.bf16.mxu0 0
    %515 = vmatpush1.bf16.msra.mxu0 %v411
    %516 = vmatprep.subr.bf16.mxu0 0
    %517 = vmatpush1.bf16.msra.mxu0 %v412
    %518 = vmatprep.subr.bf16.mxu0 0
    %519 = vmatpush1.bf16.msra.mxu0 %v413
    %520 = vmatprep.subr.bf16.mxu0 0
    %521 = vmatpush1.bf16.msra.mxu0 %v414
    %522 = vmatprep.subr.bf16.mxu0 0
    %523 = vmatpush1.bf16.msra.mxu0 %v415
    %524 = vmatprep.subr.bf16.mxu0 0
    %525 = vmatpush1.bf16.msra.mxu0 %v416
    %526 = vmatprep.subr.bf16.mxu0 0
    %527 = vmatpush1.bf16.msra.mxu0 %v417
    %528 = vmatprep.subr.bf16.mxu0 0
    %529 = vmatpush1.bf16.msra.mxu0 %v418
    %530 = vmatprep.subr.bf16.mxu0 0
    %531 = vmatpush1.bf16.msra.mxu0 %v419
    %532 = vmatprep.subr.bf16.mxu0 0
    %533 = vmatpush1.bf16.msra.mxu0 %v420
    %534 = vmatprep.subr.bf16.mxu0 0
    %535 = vmatpush1.bf16.msra.mxu0 %v421
    %536 = vmatprep.subr.bf16.mxu0 0
    %537 = vmatpush1.bf16.msra.mxu0 %v422
    %538 = vmatprep.subr.bf16.mxu0 0
    %539 = vmatpush1.bf16.msra.mxu0 %v423
    %540 = vmatprep.subr.bf16.mxu0 0
    %541 = vmatpush1.bf16.msra.mxu0 %v424
    %542 = vmatprep.subr.bf16.mxu0 0
    %543 = vmatpush1.bf16.msra.mxu0 %v425
    %544 = vmatprep.mubr.bf16.mxu0 %v202
    %545 = vmatmul.mubr.bf16.gmra.mrb[0].mxu0 %v201
    %v546 = vpop.f32.mrb[0].mxu0
    %v547 = vadd.f32 %v188, %v546
    %v548 = vpop.f32.mrb[0].mxu0
    %v549 = vpop.f32.mrb[0].mxu0
    %v550 = vpop.f32.mrb[0].mxu0
    %551 = vdwg.mxu0
    %552 = vmatprep.subr.bf16.mxu0 0
    %553 = vmatpush1.bf16.msra.mxu0 %v426
    %554 = vmatprep.subr.bf16.mxu0 0
    %555 = vmatpush1.bf16.msra.mxu0 %v427
    %556 = vmatprep.subr.bf16.mxu0 0
    %557 = vmatpush1.bf16.msra.mxu0 %v428
    %558 = vmatprep.subr.bf16.mxu0 0
    %559 = vmatpush1.bf16.msra.mxu0 %v429
    %560 = vmatprep.subr.bf16.mxu0 0
    %561 = vmatpush1.bf16.msra.mxu0 %v430
    %562 = vmatprep.subr.bf16.mxu0 0
    %563 = vmatpush1.bf16.msra.mxu0 %v431
    %564 = vmatprep.subr.bf16.mxu0 0
    %565 = vmatpush1.bf16.msra.mxu0 %v432
    %566 = vmatprep.subr.bf16.mxu0 0
    %567 = vmatpush1.bf16.msra.mxu0 %v433
    %568 = vmatprep.subr.bf16.mxu0 0
    %569 = vmatpush1.bf16.msra.mxu0 %v434
    %570 = vmatprep.subr.bf16.mxu0 0
    %571 = vmatpush1.bf16.msra.mxu0 %v435
    %572 = vmatprep.subr.bf16.mxu0 0
    %573 = vmatpush1.bf16.msra.mxu0 %v436
    %574 = vmatprep.subr.bf16.mxu0 0
    %575 = vmatpush1.bf16.msra.mxu0 %v437
    %576 = vmatprep.subr.bf16.mxu0 0
    %577 = vmatpush1.bf16.msra.mxu0 %v438
    %578 = vmatprep.subr.bf16.mxu0 0
    %579 = vmatpush1.bf16.msra.mxu0 %v439
    %580 = vmatprep.subr.bf16.mxu0 0
    %581 = vmatpush1.bf16.msra.mxu0 %v440
    %582 = vmatprep.subr.bf16.mxu0 0
    %583 = vmatpush1.bf16.msra.mxu0 %v441
    %584 = vmatprep.mubr.bf16.mxu0 %v204
    %585 = vmatmul.mubr.bf16.gmra.mrb[0].mxu0 %v203
    %v586 = vpop.f32.mrb[0].mxu0
    %v587 = vadd.f32 %v547, %v586
    %v588 = vpop.f32.mrb[0].mxu0
    %v589 = vpop.f32.mrb[0].mxu0
    %v590 = vpop.f32.mrb[0].mxu0
    %591 = vdwg.mxu0
    %592 = vmatprep.subr.bf16.mxu0 0
    %593 = vmatpush1.bf16.msra.mxu0 %v442
    %594 = vmatprep.subr.bf16.mxu0 0
    %595 = vmatpush1.bf16.msra.mxu0 %v443
    %596 = vmatprep.subr.bf16.mxu0 0
    %597 = vmatpush1.bf16.msra.mxu0 %v444
    %598 = vmatprep.subr.bf16.mxu0 0
    %599 = vmatpush1.bf16.msra.mxu0 %v445
    %600 = vmatprep.subr.bf16.mxu0 0
    %601 = vmatpush1.bf16.msra.mxu0 %v446
    %602 = vmatprep.subr.bf16.mxu0 0
    %603 = vmatpush1.bf16.msra.mxu0 %v447
    %604 = vmatprep.subr.bf16.mxu0 0
    %605 = vmatpush1.bf16.msra.mxu0 %v448
    %606 = vmatprep.subr.bf16.mxu0 0
    %607 = vmatpush1.bf16.msra.mxu0 %v449
    %608 = vmatprep.subr.bf16.mxu0 0
    %609 = vmatpush1.bf16.msra.mxu0 %v450
    %610 = vmatprep.subr.bf16.mxu0 0
    %611 = vmatpush1.bf16.msra.mxu0 %v451
    %612 = vmatprep.subr.bf16.mxu0 0
    %613 = vmatpush1.bf16.msra.mxu0 %v452
    %614 = vmatprep.subr.bf16.mxu0 0
    %615 = vmatpush1.bf16.msra.mxu0 %v453
    %616 = vmatprep.subr.bf16.mxu0 0
    %617 = vmatpush1.bf16.msra.mxu0 %v454
    %618 = vmatprep.subr.bf16.mxu0 0
    %619 = vmatpush1.bf16.msra.mxu0 %v455
    %620 = vmatprep.subr.bf16.mxu0 0
    %621 = vmatpush1.bf16.msra.mxu0 %v456
    %622 = vmatprep.subr.bf16.mxu0 0
    %623 = vmatpush1.bf16.msra.mxu0 %v457
    %624 = vmatprep.mubr.bf16.mxu0 %v206
    %625 = vmatmul.mubr.bf16.gmra.mrb[0].mxu0 %v205
    %v626 = vpop.f32.mrb[0].mxu0
    %v627 = vadd.f32 %v587, %v626
    %v628 = vpop.f32.mrb[0].mxu0
    %v629 = vpop.f32.mrb[0].mxu0
    %v630 = vpop.f32.mrb[0].mxu0
    %631 = vdwg.mxu0
    %632 = vmatprep.subr.bf16.mxu0 0
    %633 = vmatpush1.bf16.msra.mxu0 %v458
    %634 = vmatprep.subr.bf16.mxu0 0
    %635 = vmatpush1.bf16.msra.mxu0 0
    %636 = vmatprep.subr.bf16.mxu0 0
    %637 = vmatpush1.bf16.msra.mxu0 0
    %638 = vmatprep.subr.bf16.mxu0 0
    %639 = vmatpush1.bf16.msra.mxu0 0
    %640 = vmatprep.subr.bf16.mxu0 0
    %641 = vmatpush1.bf16.msra.mxu0 0
    %642 = vmatprep.subr.bf16.mxu0 0
    %643 = vmatpush1.bf16.msra.mxu0 0
    %644 = vmatprep.subr.bf16.mxu0 0
    %645 = vmatpush1.bf16.msra.mxu0 0
    %646 = vmatprep.subr.bf16.mxu0 0
    %647 = vmatpush1.bf16.msra.mxu0 0
    %648 = vmatprep.subr.bf16.mxu0 0
    %649 = vmatpush1.bf16.msra.mxu0 0
    %650 = vmatprep.subr.bf16.mxu0 0
    %651 = vmatpush1.bf16.msra.mxu0 0
    %652 = vmatprep.subr.bf16.mxu0 0
    %653 = vmatpush1.bf16.msra.mxu0 0
    %654 = vmatprep.subr.bf16.mxu0 0
    %655 = vmatpush1.bf16.msra.mxu0 0
    %656 = vmatprep.subr.bf16.mxu0 0
    %657 = vmatpush1.bf16.msra.mxu0 0
    %658 = vmatprep.subr.bf16.mxu0 0
    %659 = vmatpush1.bf16.msra.mxu0 0
    %660 = vmatprep.subr.bf16.mxu0 0
    %661 = vmatpush1.bf16.msra.mxu0 0
    %662 = vmatprep.subr.bf16.mxu0 0
    %663 = vmatpush1.bf16.msra.mxu0 0
    %664 = vmatprep.mubr.bf16.mxu0 0
    %665 = vmatmul.mubr.bf16.gmra.mrb[0].mxu0 %v510
    %v666 = vpop.f32.mrb[0].mxu0
    %v667 = vadd.f32 %v627, %v666
    %v668 = vpop.f32.mrb[0].mxu0
    %v669 = vpop.f32.mrb[0].mxu0
    %v670 = vpop.f32.mrb[0].mxu0
    %671 = vdwg.mxu0
    %v672 = vmax.f32 %v667, 0.0
    %v673 = vld [vmem:[#allocation7] sm:$0xff]
    %v674 = vld [vmem:[#allocation7 + $0x8] sm:$0xff]
    %v675 = vld [vmem:[#allocation7 + $0x10] sm:$0xff]
    %v676 = vld [vmem:[#allocation7 + $0x18] sm:$0xff]
    %v677 = vld [vmem:[#allocation7 + $0x20] sm:$0xff]
    %v678 = vld [vmem:[#allocation7 + $0x28] sm:$0xff]
    %v679 = vld [vmem:[#allocation7 + $0x30] sm:$0xff]
    %v680 = vld [vmem:[#allocation7 + $0x38] sm:$0xff]
    %v681 = vld [vmem:[#allocation7 + $0x40] sm:$0xff]
    %v682 = vld [vmem:[#allocation7 + $0x48] sm:$0xff]
    %v683 = vld [vmem:[#allocation7 + $0x50] sm:$0xff]
    %v684 = vld [vmem:[#allocation7 + $0x58] sm:$0xff]
    %v685 = vld [vmem:[#allocation7 + $0x60] sm:$0xff]
    %v686 = vld [vmem:[#allocation7 + $0x68] sm:$0xff]
    %v687 = vld [vmem:[#allocation7 + $0x70] sm:$0xff]
    %v688 = vld [vmem:[#allocation7 + $0x78] sm:$0xff]
    %v689 = vld [vmem:[%s4] sm:$0x1]
    %v691 = vlaneseq
    %v692 = vshrl.u32 %v691, 7
    %v693 = vsub.s32 0, %v692
    %v694 = vrot.slane %v689, %v693
    %696 = vmatprep.subr.mxu0 0.0
    %697 = vmatpush1.msra.mxu0 %v673
    %698 = vmatprep.subr.mxu0 0.0
    %699 = vmatpush1.msra.mxu0 %v674
    %700 = vmatprep.subr.mxu0 0.0
    %701 = vmatpush1.msra.mxu0 %v675
    %702 = vmatprep.subr.mxu0 0.0
    %703 = vmatpush1.msra.mxu0 %v676
    %704 = vmatprep.subr.mxu0 0.0
    %705 = vmatpush1.msra.mxu0 %v677
    %706 = vmatprep.subr.mxu0 0.0
    %707 = vmatpush1.msra.mxu0 %v678
    %708 = vmatprep.subr.mxu0 0.0
    %709 = vmatpush1.msra.mxu0 %v679
    %710 = vmatprep.subr.mxu0 0.0
    %711 = vmatpush1.msra.mxu0 %v680
    %712 = vmatprep.subr.mxu0 0.0
    %713 = vmatpush1.msra.mxu0 %v681
    %714 = vmatprep.subr.mxu0 0.0
    %715 = vmatpush1.msra.mxu0 %v682
    %716 = vmatprep.subr.mxu0 0.0
    %717 = vmatpush1.msra.mxu0 %v683
    %718 = vmatprep.subr.mxu0 0.0
    %719 = vmatpush1.msra.mxu0 %v684
    %720 = vmatprep.subr.mxu0 0.0
    %721 = vmatpush1.msra.mxu0 %v685
    %722 = vmatprep.subr.mxu0 0.0
    %723 = vmatpush1.msra.mxu0 %v686
    %724 = vmatprep.subr.mxu0 0.0
    %725 = vmatpush1.msra.mxu0 %v687
    %726 = vmatprep.subr.mxu0 0.0
    %727 = vmatpush1.msra.mxu0 %v688
    %728 = vmatprep.subr.mxu0 0.0
    %729 = vmatpush1.msra.mxu0 0.0
    %730 = vmatprep.subr.mxu0 0.0
    %731 = vmatpush1.msra.mxu0 0.0
    %732 = vmatprep.subr.mxu0 0.0
    %733 = vmatpush1.msra.mxu0 0.0
    %734 = vmatprep.subr.mxu0 0.0
    %735 = vmatpush1.msra.mxu0 0.0
    %736 = vmatprep.subr.mxu0 0.0
    %737 = vmatpush1.msra.mxu0 0.0
    %738 = vmatprep.subr.mxu0 0.0
    %739 = vmatpush1.msra.mxu0 0.0
    %740 = vmatprep.subr.mxu0 0.0
    %741 = vmatpush1.msra.mxu0 0.0
    %742 = vmatprep.subr.mxu0 0.0
    %743 = vmatpush1.msra.mxu0 0.0
    %744 = vmatprep.subr.mxu0 0.0
    %745 = vmatpush1.msra.mxu0 0.0
    %746 = vmatprep.subr.mxu0 0.0
    %747 = vmatpush1.msra.mxu0 0.0
    %748 = vmatprep.subr.mxu0 0.0
    %749 = vmatpush1.msra.mxu0 0.0
    %750 = vmatprep.subr.mxu0 0.0
    %751 = vmatpush1.msra.mxu0 0.0
    %752 = vmatprep.subr.mxu0 0.0
    %753 = vmatpush1.msra.mxu0 0.0
    %754 = vmatprep.subr.mxu0 0.0
    %755 = vmatpush1.msra.mxu0 0.0
    %756 = vmatprep.subr.mxu0 0.0
    %757 = vmatpush1.msra.mxu0 0.0
    %758 = vmatprep.subr.mxu0 0.0
    %759 = vmatpush1.msra.mxu0 0.0
    %760 = vmatprep.mubr.f32.mxu0 0.0
    %761 = vmatmul.mubr.f32.gmra.mrb[0].mxu0 %v672
    %v762 = vpop.f32.mrb[0].mxu0
    %v763 = vadd.f32 %v694, %v762
    %v764 = vpop.f32.mrb[0].mxu0
    %765 = vdwg.mxu0
    %v766 = vmax.f32 %v763, 0.0
    %v767 = vld [vmem:[#allocation8] sm:$0xff]
    %v768 = vld [vmem:[#allocation8 + $0x8] sm:$0xff]
    %v769 = vld [vmem:[#allocation8 + $0x10] sm:$0xff]
    %v770 = vld [vmem:[#allocation8 + $0x18] sm:$0xff]
    %v771 = vld [vmem:[#allocation8 + $0x20] sm:$0xff]
    %v772 = vld [vmem:[#allocation8 + $0x28] sm:$0xff]
    %v773 = vld [vmem:[#allocation8 + $0x30] sm:$0xff]
    %v774 = vld [vmem:[#allocation8 + $0x38] sm:$0xff]
    %v775 = vld [vmem:[#allocation8 + $0x40] sm:$0xff]
    %v776 = vld [vmem:[#allocation8 + $0x48] sm:$0xff]
    %v777 = vld [vmem:[#allocation8 + $0x50] sm:$0xff]
    %v778 = vld [vmem:[#allocation8 + $0x58] sm:$0xff]
    %v779 = vld [vmem:[#allocation8 + $0x60] sm:$0xff]
    %v780 = vld [vmem:[#allocation8 + $0x68] sm:$0xff]
    %v781 = vld [vmem:[#allocation8 + $0x70] sm:$0xff]
    %v782 = vld [vmem:[#allocation8 + $0x78] sm:$0xff]
    %v783 = vld [vmem:[%s6] sm:$0x1]
    %v785 = vlaneseq
    %v786 = vshrl.u32 %v785, 7
    %v787 = vsub.s32 0, %v786
    %v788 = vrot.slane %v783, %v787
    %790 = vmatprep.subr.mxu0 0.0
    %791 = vmatpush1.msra.mxu0 %v767
    %792 = vmatprep.subr.mxu0 0.0
    %793 = vmatpush1.msra.mxu0 %v768
    %794 = vmatprep.subr.mxu0 0.0
    %795 = vmatpush1.msra.mxu0 %v769
    %796 = vmatprep.subr.mxu0 0.0
    %797 = vmatpush1.msra.mxu0 %v770
    %798 = vmatprep.subr.mxu0 0.0
    %799 = vmatpush1.msra.mxu0 %v771
    %800 = vmatprep.subr.mxu0 0.0
    %801 = vmatpush1.msra.mxu0 %v772
    %802 = vmatprep.subr.mxu0 0.0
    %803 = vmatpush1.msra.mxu0 %v773
    %804 = vmatprep.subr.mxu0 0.0
    %805 = vmatpush1.msra.mxu0 %v774
    %806 = vmatprep.subr.mxu0 0.0
    %807 = vmatpush1.msra.mxu0 %v775
    %808 = vmatprep.subr.mxu0 0.0
    %809 = vmatpush1.msra.mxu0 %v776
    %810 = vmatprep.subr.mxu0 0.0
    %811 = vmatpush1.msra.mxu0 %v777
    %812 = vmatprep.subr.mxu0 0.0
    %813 = vmatpush1.msra.mxu0 %v778
    %814 = vmatprep.subr.mxu0 0.0
    %815 = vmatpush1.msra.mxu0 %v779
    %816 = vmatprep.subr.mxu0 0.0
    %817 = vmatpush1.msra.mxu0 %v780
    %818 = vmatprep.subr.mxu0 0.0
    %819 = vmatpush1.msra.mxu0 %v781
    %820 = vmatprep.subr.mxu0 0.0
    %821 = vmatpush1.msra.mxu0 %v782
    %822 = vmatprep.subr.mxu0 0.0
    %823 = vmatpush1.msra.mxu0 0.0
    %824 = vmatprep.subr.mxu0 0.0
    %825 = vmatpush1.msra.mxu0 0.0
    %826 = vmatprep.subr.mxu0 0.0
    %827 = vmatpush1.msra.mxu0 0.0
    %828 = vmatprep.subr.mxu0 0.0
    %829 = vmatpush1.msra.mxu0 0.0
    %830 = vmatprep.subr.mxu0 0.0
    %831 = vmatpush1.msra.mxu0 0.0
    %832 = vmatprep.subr.mxu0 0.0
    %833 = vmatpush1.msra.mxu0 0.0
    %834 = vmatprep.subr.mxu0 0.0
    %835 = vmatpush1.msra.mxu0 0.0
    %836 = vmatprep.subr.mxu0 0.0
    %837 = vmatpush1.msra.mxu0 0.0
    %838 = vmatprep.subr.mxu0 0.0
    %839 = vmatpush1.msra.mxu0 0.0
    %840 = vmatprep.subr.mxu0 0.0
    %841 = vmatpush1.msra.mxu0 0.0
    %842 = vmatprep.subr.mxu0 0.0
    %843 = vmatpush1.msra.mxu0 0.0
    %844 = vmatprep.subr.mxu0 0.0
    %845 = vmatpush1.msra.mxu0 0.0
    %846 = vmatprep.subr.mxu0 0.0
    %847 = vmatpush1.msra.mxu0 0.0
    %848 = vmatprep.subr.mxu0 0.0
    %849 = vmatpush1.msra.mxu0 0.0
    %850 = vmatprep.subr.mxu0 0.0
    %851 = vmatpush1.msra.mxu0 0.0
    %852 = vmatprep.subr.mxu0 0.0
    %853 = vmatpush1.msra.mxu0 0.0
    %854 = vmatprep.mubr.f32.mxu0 0.0
    %855 = vmatmul.mubr.f32.gmra.mrb[0].mxu0 %v766
    %v856 = vpop.f32.mrb[0].mxu0
    %v857 = vadd.f32 %v788, %v856
    %v858 = vpop.f32.mrb[0].mxu0
    %859 = vdwg.mxu0
    %860 = vst [vmem:[#allocation10] sm:$0xff] %v857
    // Predicated region
    $region46: #{tpu_custom_call.1} parent=1 // pred_check
      _
    $region47: #{tpu_custom_call.1} parent=1 // pred_check_branch
      %862 = sbr.rel (0) target = $region49
    $region48: #{tpu_custom_call.1} parent=1 // pred_region
      %s864 = ssub.s32 128, 128
      %865 = vsyncadd [#allocation4], %s864
      %s867 = sshll.u32 [#allocation10], 4
      %s868 = int_to_ptr.vmem [resolvable:$true] %s867
      %870 = dma.vmem_to_hbm [thread:$0]  %s868, 128, %s7, [#allocation4]
    $region49: #{tpu_custom_call.1} parent=1 // pred_fallthru
      _
    // Predicated region
    $region50: #{tpu_custom_call.1} parent=1 // pred_check
      _
    $region51: #{tpu_custom_call.1} parent=1 // pred_check_branch
      %872 = sbr.rel (0) target = $region53
    $region52: #{tpu_custom_call.1} parent=1 // pred_region
      %873 = dma.done [#allocation4], 128
    $region53: #{tpu_custom_call.1} parent=1 // pred_fallthru
      _
    %874 = vsyncpa [#allocation3], 1
    %875 = vsyncpa [#allocation6], 1
    %876 = vsyncpa [#allocation9], 1
    %877 = vsyncpa [#allocation4], 1

</llo_original>
